<compile_context>
chip_gen: v7x
topology: tpu7x:2x2x1
jax: 0.10.0
libtpu: 0.0.40
codegen_flags: <defaults>
</compile_context>

<pallas_src>
import functools

import jax
import jax.numpy as jnp
from jax.experimental import pallas as pl
from jax.experimental.pallas import tpu as pltpu


def _cwd_kernel(s_ref, t_ref, m_ref, o_ref, *, tau):
    """Per-(sample, channel-tile) partial KL, accumulated into o_ref.

    s_ref, t_ref : (1, TC, HW)  streamed inputs (bf16 by default), upcast to f32
    m_ref        : (1, 1, HW)   depth map (f32); a pixel is valid iff value > 0
    o_ref        : (1, 1, 1)    f32 accumulator, resident across the c axis
    """
    c_idx = pl.program_id(1)

    @pl.when(c_idx == 0)
    def _():
        o_ref[...] = jnp.zeros_like(o_ref)

    inv_tau = jnp.float32(1.0 / tau)
    s = s_ref[0].astype(jnp.float32) * inv_tau        # (TC, HW)
    t = t_ref[0].astype(jnp.float32) * inv_tau        # (TC, HW)
    mask = m_ref[0] > 0                               # (1, HW) -> bcast over TC

    big_neg = jnp.float32(-1e30)
    s_m = jnp.where(mask, s, big_neg)
    t_m = jnp.where(mask, t, big_neg)

    # Numerically-stable masked softmax statistics (lane-axis reductions).
    s_max = jnp.max(s_m, axis=-1, keepdims=True)      # (TC, 1)
    t_max = jnp.max(t_m, axis=-1, keepdims=True)
    # exp of the *masked* operand: invalid pixels underflow to exactly 0,
    # so no additional selects are required.
    s_exp = jnp.exp(s_m - s_max)
    t_exp = jnp.exp(t_m - t_max)
    s_sum = jnp.sum(s_exp, axis=-1, keepdims=True)    # (TC, 1)
    t_sum = jnp.sum(t_exp, axis=-1, keepdims=True)

    # KL per channel without materializing log-softmaxes:
    #   KL_c = sum_px p_T*(t - s) + (s_max - t_max) + (log s_sum - log t_sum)
    # (sum_px p_T = 1 over valid pixels; t_exp is exactly 0 on invalid pixels,
    #  so t_exp*(t - s) contributes nothing there.)
    w = jnp.sum(t_exp * (t - s), axis=-1, keepdims=True)   # (TC, 1)
    kl_c = w / t_sum + (s_max - t_max) + (jnp.log(s_sum) - jnp.log(t_sum))

    o_ref[...] += jnp.sum(kl_c)


def _pick_channel_tile(C, HW, itemsize, budget_bytes=12 << 20):
    """Channel tile: a multiple of 8 that divides C (or C itself when C % 8 != 0,
    in which case the block equals the full channel dim, which is also legal).
    Sized so that 2 inputs x 2 pipeline buffers x (TC*HW*itemsize) stays under
    `budget_bytes` (fits v5e/v6e/v7x scoped VMEM with headroom), while taking
    the largest admissible tile so each DMA slab stays bandwidth-efficient."""
    if C % 8 != 0:
        return C
    max_tc = max(8, budget_bytes // (4 * HW * itemsize))
    tc = 8
    for cand in range(8, C + 1, 8):
        if C % cand == 0 and cand <= max_tc:
            tc = cand
    return tc


def channel_wise_divergence(preds_S, preds_T, depth_gt_resized,
                            tau=1.0, loss_weight=1.0,
                            stream_dtype=jnp.bfloat16, channel_tile=None):
    """preds_S, preds_T: (N, C, H, W); depth_gt_resized: (N, 1, H, W)."""
    N, C, H, W = preds_S.shape
    assert preds_T.shape[-2:] == preds_S.shape[-2:]
    HW = H * W  # blocks span the full HW dim, so no 128-multiple requirement.

    # Stream the big tensors at reduced precision (kernel is HBM-bound);
    # all math inside the kernel is float32.
    s = preds_S.astype(stream_dtype).reshape(N, C, HW)
    t = preds_T.astype(stream_dtype).reshape(N, C, HW)
    m = depth_gt_resized.reshape(N, 1, HW).astype(jnp.float32)

    itemsize = jnp.dtype(stream_dtype).itemsize
    TC = channel_tile if channel_tile is not None else _pick_channel_tile(
        C, HW, itemsize)
    assert C % TC == 0, "channel tile must divide C"
    num_c_tiles = C // TC
    # TODO(synk): add an HW (pixel) reduction axis with an online masked
    # softmax for segmentation-scale images where even a TC=8 slab would
    # exceed VMEM on v7x.

    kernel = functools.partial(_cwd_kernel, tau=float(tau))

    cost = pl.CostEstimate(
        flops=12 * N * C * HW,
        transcendentals=2 * N * C * HW,
        bytes_accessed=2 * N * C * HW * itemsize + num_c_tiles * N * HW * 4 + N * 4,
    )

    per_sample = pl.pallas_call(
        kernel,
        out_shape=jax.ShapeDtypeStruct((N, 1, 1), jnp.float32),
        grid_spec=pltpu.PrefetchScalarGridSpec(
            num_scalar_prefetch=0,
            grid=(N, num_c_tiles),            # reduction (channel-tile) axis last
            in_specs=[
                pl.BlockSpec((1, TC, HW), lambda i, c: (i, c, 0)),
                pl.BlockSpec((1, TC, HW), lambda i, c: (i, c, 0)),
                pl.BlockSpec((1, 1, HW), lambda i, c: (i, 0, 0)),
            ],
            out_specs=pl.BlockSpec((1, 1, 1), lambda i, c: (i, 0, 0)),
        ),
        compiler_params=pltpu.CompilerParams(
            dimension_semantics=("parallel", "arbitrary"),
            vmem_limit_bytes=32 << 20,
        ),
        cost_estimate=cost,
    )(s, t, m)

    loss = jnp.sum(per_sample) / (C * N)
    return loss_weight * (tau ** 2) * loss


def _reference(preds_S, preds_T, depth_gt_resized, tau=1.0, loss_weight=1.0):
    """Pure-JAX reference with the module's masked-softmax + KL(sum) semantics."""
    N, C, H, W = preds_S.shape
    s = preds_S.reshape(N, C, -1) / tau
    t = preds_T.reshape(N, C, -1) / tau
    mask = depth_gt_resized.reshape(N, 1, -1) > 0
    big_neg = -1e30
    s_m = jnp.where(mask, s, big_neg)
    t_m = jnp.where(mask, t, big_neg)
    s_max = jnp.max(s_m, axis=-1, keepdims=True)
    t_max = jnp.max(t_m, axis=-1, keepdims=True)
    s_exp = jnp.where(mask, jnp.exp(s - s_max), 0.0)
    t_exp = jnp.where(mask, jnp.exp(t - t_max), 0.0)
    log_p_s = (s - s_max) - jnp.log(jnp.sum(s_exp, axis=-1, keepdims=True))
    log_p_t = (t - t_max) - jnp.log(jnp.sum(t_exp, axis=-1, keepdims=True))
    p_t = t_exp / jnp.sum(t_exp, axis=-1, keepdims=True)
    kl = jnp.sum(jnp.where(mask, p_t * (log_p_t - log_p_s), 0.0))
    return loss_weight * tau ** 2 * kl / (C * N)


if __name__ == "__main__":
    key = jax.random.PRNGKey(0)
    k1, k2, k3, k4, k5, k6 = jax.random.split(key, 6)

    # Inputs are round-tripped through bf16 so the bf16-streamed kernel sees
    # exactly the same values as the float32 reference (tight comparison).

    # Case 1: small shapes; C not a multiple of 8 -> single full-channel tile.
    N, C, H, W = 2, 4, 16, 16
    preds_S = jax.random.normal(k1, (N, C, H, W), jnp.float32).astype(
        jnp.bfloat16).astype(jnp.float32)
    preds_T = jax.random.normal(k2, (N, C, H, W), jnp.float32).astype(
        jnp.bfloat16).astype(jnp.float32)
    depth_gt = jax.random.normal(k3, (N, 1, H, W), dtype=jnp.float32)

    loss = channel_wise_divergence(preds_S, preds_T, depth_gt,
                                   tau=1.0, loss_weight=1.0)
    loss = jax.block_until_ready(loss)
    ref = _reference(preds_S, preds_T, depth_gt, tau=1.0, loss_weight=1.0)
    assert jnp.allclose(loss, ref, rtol=1e-4, atol=1e-4), (loss, ref)

    # Case 2: exercises the channel-tiled grid (C=16, TC=8 -> 2 c-tiles with
    # in-kernel accumulation across the "arbitrary" axis).
    N2, C2, H2, W2 = 2, 16, 16, 16
    pS2 = jax.random.normal(k4, (N2, C2, H2, W2), jnp.float32).astype(
        jnp.bfloat16).astype(jnp.float32)
    pT2 = jax.random.normal(k5, (N2, C2, H2, W2), jnp.float32).astype(
        jnp.bfloat16).astype(jnp.float32)
    d2 = jax.random.normal(k6, (N2, 1, H2, W2), dtype=jnp.float32)

    loss2 = channel_wise_divergence(pS2, pT2, d2, tau=2.0, loss_weight=0.5,
                                    channel_tile=8)
    loss2 = jax.block_until_ready(loss2)
    ref2 = _reference(pS2, pT2, d2, tau=2.0, loss_weight=0.5)
    assert jnp.allclose(loss2, ref2, rtol=1e-4, atol=1e-4), (loss2, ref2)

    print("KERNEL_OK")
</pallas_src>

<mosaic_0001>
module attributes {stable_mosaic.version = 11 : i64} {
  func.func @_cwd_kernel(%arg0: i32, %arg1: i32, %arg2: memref<1x4x256xbf16, #tpu.memory_space<vmem>>, %arg3: memref<1x4x256xbf16, #tpu.memory_space<vmem>>, %arg4: memref<1x1x256xf32, #tpu.memory_space<vmem>>, %arg5: memref<1x1x1xf32, #tpu.memory_space<vmem>>) attributes {dimension_semantics = [#tpu.dimension_semantics<parallel>, #tpu.dimension_semantics<arbitrary>], iteration_bounds = array<i64: 2, 1>, scalar_prefetch = 0 : i64, scratch_operands = 0 : i64, tpu.core_type = #tpu.core_type<tc>, window_params = [{transform_indices = @transform_0, window_bounds = array<i64: 1, 4, 256>}, {transform_indices = @transform_1, window_bounds = array<i64: 1, 4, 256>}, {transform_indices = @transform_2, window_bounds = array<i64: 1, 1, 256>}, {transform_indices = @transform_3, window_bounds = array<i64: 1, 1, 1>}]} {
    %c0_i32 = arith.constant 0 : i32
    %0 = arith.cmpi eq, %arg1, %c0_i32 : i32
    %1 = arith.extui %0 : i1 to i32
    %c0_i32_0 = arith.constant 0 : i32
    %2 = arith.cmpi ne, %1, %c0_i32_0 : i32
    scf.if %2 {
      %cst_25 = arith.constant 0.000000e+00 : f32
      %58 = vector.broadcast %cst_25 : f32 to vector<1x1x1xf32>
      %c0_26 = arith.constant 0 : index
      %c0_27 = arith.constant 0 : index
      %c0_28 = arith.constant 0 : index
      %59 = vector.load %arg5[%c0_26, %c0_27, %c0_28] : memref<1x1x1xf32, #tpu.memory_space<vmem>>, vector<1x1x1xf32>
      tpu.vector_store %arg5[%c0_26, %c0_27, %c0_28], %58 {strides = array<i32>} : memref<1x1x1xf32, #tpu.memory_space<vmem>>, vector<1x1x1xf32>,
    } else {
    }
    %c0 = arith.constant 0 : index
    %c0_1 = arith.constant 0 : index
    %c0_2 = arith.constant 0 : index
    %3 = vector.load %arg2[%c0, %c0_1, %c0_2] : memref<1x4x256xbf16, #tpu.memory_space<vmem>>, vector<1x4x256xbf16>
    %4 = vector.shape_cast %3 : vector<1x4x256xbf16> to vector<4x256xbf16>
    %5 = arith.extf %4 : vector<4x256xbf16> to vector<4x256xf32>
    %cst = arith.constant 1.000000e+00 : f32
    %6 = vector.broadcast %cst : f32 to vector<4x256xf32>
    %7 = arith.mulf %5, %6 : vector<4x256xf32>
    %c0_3 = arith.constant 0 : index
    %c0_4 = arith.constant 0 : index
    %c0_5 = arith.constant 0 : index
    %8 = vector.load %arg3[%c0_3, %c0_4, %c0_5] : memref<1x4x256xbf16, #tpu.memory_space<vmem>>, vector<1x4x256xbf16>
    %9 = vector.shape_cast %8 : vector<1x4x256xbf16> to vector<4x256xbf16>
    %10 = arith.extf %9 : vector<4x256xbf16> to vector<4x256xf32>
    %cst_6 = arith.constant 1.000000e+00 : f32
    %11 = vector.broadcast %cst_6 : f32 to vector<4x256xf32>
    %12 = arith.mulf %10, %11 : vector<4x256xf32>
    %c0_7 = arith.constant 0 : index
    %c0_8 = arith.constant 0 : index
    %c0_9 = arith.constant 0 : index
    %13 = vector.load %arg4[%c0_7, %c0_8, %c0_9] : memref<1x1x256xf32, #tpu.memory_space<vmem>>, vector<1x1x256xf32>
    %14 = vector.shape_cast %13 : vector<1x1x256xf32> to vector<1x256xf32>
    %cst_10 = arith.constant 0.000000e+00 : f32
    %15 = vector.broadcast %cst_10 : f32 to vector<1x256xf32>
    %16 = arith.cmpf ogt, %14, %15 : vector<1x256xf32>
    %cst_11 = arith.constant -1.000000e+30 : f32
    %17 = vector.shape_cast %16 : vector<1x256xi1> to vector<1x256xi1>
    %18 = vector.broadcast %17 : vector<1x256xi1> to vector<4x256xi1>
    %19 = vector.broadcast %cst_11 : f32 to vector<4x256xf32>
    %20 = arith.select %18, %7, %19 : vector<4x256xi1>, vector<4x256xf32>
    %cst_12 = arith.constant -1.000000e+30 : f32
    %21 = vector.shape_cast %16 : vector<1x256xi1> to vector<1x256xi1>
    %22 = vector.broadcast %21 : vector<1x256xi1> to vector<4x256xi1>
    %23 = vector.broadcast %cst_12 : f32 to vector<4x256xf32>
    %24 = arith.select %22, %12, %23 : vector<4x256xi1>, vector<4x256xf32>
    %cst_13 = arith.constant dense<0xFF800000> : vector<4xf32>
    %25 = vector.multi_reduction <maximumf>, %20, %cst_13 [1] : vector<4x256xf32> to vector<4xf32>
    %26 = vector.shape_cast %25 : vector<4xf32> to vector<4x1xf32>
    %cst_14 = arith.constant dense<0xFF800000> : vector<4xf32>
    %27 = vector.multi_reduction <maximumf>, %24, %cst_14 [1] : vector<4x256xf32> to vector<4xf32>
    %28 = vector.shape_cast %27 : vector<4xf32> to vector<4x1xf32>
    %29 = vector.broadcast %26 : vector<4x1xf32> to vector<4x256xf32>
    %30 = arith.subf %20, %29 : vector<4x256xf32>
    %31 = math.exp %30 : vector<4x256xf32>
    %32 = vector.broadcast %28 : vector<4x1xf32> to vector<4x256xf32>
    %33 = arith.subf %24, %32 : vector<4x256xf32>
    %34 = math.exp %33 : vector<4x256xf32>
    %cst_15 = arith.constant dense<0.000000e+00> : vector<4xf32>
    %35 = vector.multi_reduction <add>, %31, %cst_15 [1] : vector<4x256xf32> to vector<4xf32>
    %36 = vector.shape_cast %35 : vector<4xf32> to vector<4x1xf32>
    %cst_16 = arith.constant dense<0.000000e+00> : vector<4xf32>
    %37 = vector.multi_reduction <add>, %34, %cst_16 [1] : vector<4x256xf32> to vector<4xf32>
    %38 = vector.shape_cast %37 : vector<4xf32> to vector<4x1xf32>
    %39 = arith.subf %12, %7 : vector<4x256xf32>
    %40 = arith.mulf %34, %39 : vector<4x256xf32>
    %cst_17 = arith.constant dense<0.000000e+00> : vector<4xf32>
    %41 = vector.multi_reduction <add>, %40, %cst_17 [1] : vector<4x256xf32> to vector<4xf32>
    %42 = vector.shape_cast %41 : vector<4xf32> to vector<4x1xf32>
    %43 = arith.divf %42, %38 : vector<4x1xf32>
    %44 = arith.subf %26, %28 : vector<4x1xf32>
    %45 = arith.addf %43, %44 : vector<4x1xf32>
    %46 = math.log %36 : vector<4x1xf32>
    %47 = math.log %38 : vector<4x1xf32>
    %48 = arith.subf %46, %47 : vector<4x1xf32>
    %49 = arith.addf %45, %48 : vector<4x1xf32>
    %c0_18 = arith.constant 0 : index
    %c0_19 = arith.constant 0 : index
    %c0_20 = arith.constant 0 : index
    %50 = vector.load %arg5[%c0_18, %c0_19, %c0_20] : memref<1x1x1xf32, #tpu.memory_space<vmem>>, vector<1x1x1xf32>
    %51 = vector.shape_cast %49 : vector<4x1xf32> to vector<1x4x1xf32>
    %cst_21 = arith.constant dense<0.000000e+00> : vector<1xf32>
    %52 = vector.multi_reduction <add>, %51, %cst_21 [1, 2] : vector<1x4x1xf32> to vector<1xf32>
    %53 = vector.shape_cast %52 : vector<1xf32> to vector<1x1x1xf32>
    %54 = vector.extract %53[0, 0, 0] : f32 from vector<1x1x1xf32>
    %55 = vector.broadcast %54 : f32 to vector<1x1x1xf32>
    %56 = arith.addf %50, %55 : vector<1x1x1xf32>
    %c0_22 = arith.constant 0 : index
    %c0_23 = arith.constant 0 : index
    %c0_24 = arith.constant 0 : index
    %57 = vector.load %arg5[%c0_22, %c0_23, %c0_24] : memref<1x1x1xf32, #tpu.memory_space<vmem>>, vector<1x1x1xf32>
    tpu.vector_store %arg5[%c0_22, %c0_23, %c0_24], %56 {strides = array<i32>} : memref<1x1x1xf32, #tpu.memory_space<vmem>>, vector<1x1x1xf32>,
    return
  }
  func.func @transform_0(%arg0: i32, %arg1: i32) -> (i32, i32, i32) {
    %c0_i32 = arith.constant 0 : i32
    %c0_i32_0 = arith.constant 0 : i32
    return %arg0, %arg1, %c0_i32 : i32, i32, i32
  }
  func.func @transform_1(%arg0: i32, %arg1: i32) -> (i32, i32, i32) {
    %c0_i32 = arith.constant 0 : i32
    %c0_i32_0 = arith.constant 0 : i32
    return %arg0, %arg1, %c0_i32 : i32, i32, i32
  }
  func.func @transform_2(%arg0: i32, %arg1: i32) -> (i32, i32, i32) {
    %c0_i32 = arith.constant 0 : i32
    %c0_i32_0 = arith.constant 0 : i32
    %c0_i32_1 = arith.constant 0 : i32
    return %arg0, %c0_i32, %c0_i32_0 : i32, i32, i32
  }
  func.func @transform_3(%arg0: i32, %arg1: i32) -> (i32, i32, i32) {
    %c0_i32 = arith.constant 0 : i32
    %c0_i32_0 = arith.constant 0 : i32
    %c0_i32_1 = arith.constant 0 : i32
    return %arg0, %c0_i32, %c0_i32_0 : i32, i32, i32
  }
}

</mosaic_0001>

<llo_original>
// kernel: tpu_custom_call.1
$region0: #{tpu_custom_call.1}
  #allocation0 [shape = 'u32[]', space=smem, size = 0x4, offset = 0x4, fixed_abs, tag = 'smem constant byte address 0x4 - core index']
  #allocation1 [shape = 'u32[144,128]{1,0:T(1,128)}', space=vmem, size = 0x12000, scoped, tag = 'internal scratch']
  %s0 = inlined_call_operand.hbm [shape: bf16[2,4,256], index: 0, kind: input, shape index: {}]
  %s1 = inlined_call_operand.hbm [shape: bf16[2,4,256], index: 1, kind: input, shape index: {}]
  %s2 = inlined_call_operand.vmem [shape: f32[2,1,256], index: 2, kind: input, shape index: {}]
  %s3 = inlined_call_operand.vmem [shape: f32[2,1,1], index: 3, kind: output, shape index: {}]
  %s4 = sld [smem:[#allocation0]]
  $region57: #{tpu_custom_call.1} parent=0
    _
  %s6 = ssub.s32 1, %s4
  %s7 = scalar_select 0, %s6, %s4
  $region1: #{tpu_custom_call.1} parent=0
    #allocation2 [shape = 'u8[4096]{0}', space=vmem, size = 0x1000, scoped, tag = 'input window, operand 0']
    #allocation3 [shape = 's32[2]{0}', space=sflag, size = 0x8, scoped, tag = 'scoped memory for tpu_custom_call.1']
    #allocation4 [shape = 'u8[4096]{0}', space=vmem, size = 0x1000, scoped, tag = 'input window, operand 1']
    #allocation5 [shape = 's32[2]{0}', space=sflag, size = 0x8, scoped, tag = 'scoped memory for tpu_custom_call.1']
    %8 = vsyncpa [#allocation3], 0
    %s9 = scalar_lea.sflag [#allocation3], 1
    %10 = vsyncpa %s9, 0
    %11 = vsyncpa [#allocation5], 0
    %s12 = scalar_lea.sflag [#allocation5], 1
    %13 = vsyncpa %s12, 0
    loop: start=0, step=1, limit=4
    $region2: #{tpu_custom_call.1} parent=1 // loop_pre_header
      _
    $region3: #{tpu_custom_call.1} parent=1 // loop_header
      %s15 = sphi 0, %s19
      %p16 = scmp.ge.s32.totalorder %s15, 4
      %s22 = sphi 0, %s34
      %s23 = sphi 0, %s30
      %s24 = sphi 0, %s22
      %s25 = sphi 0, %s23
      %s26 = sphi 0, %s24
      %s27 = sphi 0, %s25
      %s39 = sphi 0, %s41
      %s42 = sphi 0, %s39
      %s43 = sphi 0, %s42
      %s59 = sphi 0, %s43
      %s67 = sphi 0, %s69
      %s70 = sphi 0, %s67
      %s71 = sphi 0, %s70
      %s87 = sphi 0, %s71
      %s93 = sphi 0, %s95
      %s96 = sphi 0, %s93
      %s97 = sphi 0, %s96
      %s113 = sphi 0, %s97
      %s119 = sphi 0, %s121
      %s122 = sphi 0, %s119
      %s123 = sphi 0, %s122
      %s139 = sphi 0, %s123
    $region4: #{tpu_custom_call.1} parent=1 // loop_header_branch
      %18 = sbr.rel (%p16) target = $region8
    $region5: #{tpu_custom_call.1} parent=1 // loop_body
      %s20 = ssub.s32 %s15, 1
      %s21 = ssub.s32 %s15, 2
      %s28 = sadd.s32 1, %s23
      %p29 = scmp.ge.s32.totalorder %s28, 1
      %s30 = scalar_select %p29, 0, %s28
      %s31 = sadd.s32 1, %s22
      %s32 = scalar_select %p29, %s31, %s22
      %p33 = scmp.ge.s32.totalorder %s32, 2
      %s34 = scalar_select %p33, 0, %s32
      %s35 = ssub.s32 %s22, %s34
      %s36 = ssub.s32 %s23, %s30
      %s37 = sor.u32 %s35, %s36
      %p38 = scmp.eq.s32.totalorder %s37, 0
      %s40 = sadd.s32 %s39, 1
      %s41 = scalar_select %p38, %s39, %s40
      %p44 = pneg %p38
      %p45 = scmp.eq.s32.totalorder %s15, 1
      %p46 = por %p44, %p45
      %p47 = scmp.ne.s32.totalorder %s39, %s42
      %p48 = scmp.eq.s32.totalorder %s15, 0
      %p49 = por %p47, %p48
      %p50 = scmp.ne.s32.totalorder %s39, %s42
      %p51 = scmp.eq.s32.totalorder %s20, 1
      %p52 = por %p50, %p51
      %p53 = scmp.ne.s32.totalorder %s42, %s43
      %p54 = scmp.eq.s32.totalorder %s20, 0
      %p55 = por %p53, %p54
      %p56 = scmp.ne.s32.totalorder %s42, %s43
      %p57 = scmp.eq.s32.totalorder %s21, 1
      %p58 = por %p56, %p57
      %p60 = scmp.ne.s32.totalorder %s43, %s59
      %p61 = scmp.eq.s32.totalorder %s21, 0
      %p62 = por %p60, %p61
      %s63 = ssub.s32 %s22, %s34
      %s64 = ssub.s32 %s23, %s30
      %s65 = sor.u32 %s63, %s64
      %p66 = scmp.eq.s32.totalorder %s65, 0
      %s68 = sadd.s32 %s67, 1
      %s69 = scalar_select %p66, %s67, %s68
      %p72 = pneg %p66
      %p73 = scmp.eq.s32.totalorder %s15, 1
      %p74 = por %p72, %p73
      %p75 = scmp.ne.s32.totalorder %s67, %s70
      %p76 = scmp.eq.s32.totalorder %s15, 0
      %p77 = por %p75, %p76
      %p78 = scmp.ne.s32.totalorder %s67, %s70
      %p79 = scmp.eq.s32.totalorder %s20, 1
      %p80 = por %p78, %p79
      %p81 = scmp.ne.s32.totalorder %s70, %s71
      %p82 = scmp.eq.s32.totalorder %s20, 0
      %p83 = por %p81, %p82
      %p84 = scmp.ne.s32.totalorder %s70, %s71
      %p85 = scmp.eq.s32.totalorder %s21, 1
      %p86 = por %p84, %p85
      %p88 = scmp.ne.s32.totalorder %s71, %s87
      %p89 = scmp.eq.s32.totalorder %s21, 0
      %p90 = por %p88, %p89
      %s91 = ssub.s32 %s22, %s34
      %p92 = scmp.eq.s32.totalorder %s91, 0
      %s94 = sadd.s32 %s93, 1
      %s95 = scalar_select %p92, %s93, %s94
      %p98 = pneg %p92
      %p99 = scmp.eq.s32.totalorder %s15, 1
      %p100 = por %p98, %p99
      %p101 = scmp.ne.s32.totalorder %s93, %s96
      %p102 = scmp.eq.s32.totalorder %s15, 0
      %p103 = por %p101, %p102
      %p104 = scmp.ne.s32.totalorder %s93, %s96
      %p105 = scmp.eq.s32.totalorder %s20, 1
      %p106 = por %p104, %p105
      %p107 = scmp.ne.s32.totalorder %s96, %s97
      %p108 = scmp.eq.s32.totalorder %s20, 0
      %p109 = por %p107, %p108
      %p110 = scmp.ne.s32.totalorder %s96, %s97
      %p111 = scmp.eq.s32.totalorder %s21, 1
      %p112 = por %p110, %p111
      %p114 = scmp.ne.s32.totalorder %s97, %s113
      %p115 = scmp.eq.s32.totalorder %s21, 0
      %p116 = por %p114, %p115
      %s117 = ssub.s32 %s22, %s34
      %p118 = scmp.eq.s32.totalorder %s117, 0
      %s120 = sadd.s32 %s119, 1
      %s121 = scalar_select %p118, %s119, %s120
      %p124 = pneg %p118
      %p125 = scmp.eq.s32.totalorder %s15, 1
      %p126 = por %p124, %p125
      %p127 = scmp.ne.s32.totalorder %s119, %s122
      %p128 = scmp.eq.s32.totalorder %s15, 0
      %p129 = por %p127, %p128
      %p130 = scmp.ne.s32.totalorder %s119, %s122
      %p131 = scmp.eq.s32.totalorder %s20, 1
      %p132 = por %p130, %p131
      %p133 = scmp.ne.s32.totalorder %s122, %s123
      %p134 = scmp.eq.s32.totalorder %s20, 0
      %p135 = por %p133, %p134
      %p136 = scmp.ne.s32.totalorder %s122, %s123
      %p137 = scmp.eq.s32.totalorder %s21, 1
      %p138 = por %p136, %p137
      %p140 = scmp.ne.s32.totalorder %s123, %s139
      %p141 = scmp.eq.s32.totalorder %s21, 0
      %p142 = por %p140, %p141
      %p143 = scmp.le.s32.totalorder 1, %s15
      %p144 = scmp.lt.s32.totalorder %s15, 3
      %p145 = pnand %p143, %p144
      %p146 = pneg %p145
      // Predicated region
      $region9: #{tpu_custom_call.1} parent=5 // pred_check
        _
      $region10: #{tpu_custom_call.1} parent=5 // pred_check_branch
        %148 = sbr.rel (%p145) target = $region12
      $region11: #{tpu_custom_call.1} parent=5 // pred_region
        %s149 = ssub.s32 %s15, 1
      $region12: #{tpu_custom_call.1} parent=5 // pred_fallthru
        _
      %p150 = scmp.lt.s32.totalorder %s15, 2
      // Predicated region
      $region13: #{tpu_custom_call.1} parent=5 // pred_check
        %p151 = pneg %p150
      $region14: #{tpu_custom_call.1} parent=5 // pred_check_branch
        %153 = sbr.rel (%p151) target = $region16
      $region15: #{tpu_custom_call.1} parent=5 // pred_region
        // Predicated region
        $region17: #{tpu_custom_call.1} parent=15 // pred_check
          %p154 = pneg %p49
        $region18: #{tpu_custom_call.1} parent=15 // pred_check_branch
          %156 = sbr.rel (%p154) target = $region20
        $region19: #{tpu_custom_call.1} parent=15 // pred_region
          %s157 = sand.u32 %s39, 1
          %s158 = scalar_lea.sflag [#allocation3], %s157
          %s159 = sand.u32 %s39, 1
          %s160 = smul.addr %s159, 4
          %s161 = scalar_lea.vmem [#allocation2], %s160
          %s163 = ssub.s32 64, 64
          %164 = vsyncadd %s158, %s163
          %s165 = smul.addr %s23, 2
          %s166 = smul.addr %s22, 2
          %s167 = sadd.s32 %s165, %s166
          %s168 = smul.addr %s167, 32
          %s169 = scalar_lea.hbm %s0, %s168
          %s171 = sshll.u32 %s161, 4
          %s172 = int_to_ptr.vmem [resolvable:$true] %s171
          %174 = dma.hbm_to_vmem [thread:$0]  %s169, 64, %s172, %s158
        $region20: #{tpu_custom_call.1} parent=15 // pred_fallthru
          _
        // Predicated region
        $region21: #{tpu_custom_call.1} parent=15 // pred_check
          %p175 = pneg %p77
        $region22: #{tpu_custom_call.1} parent=15 // pred_check_branch
          %177 = sbr.rel (%p175) target = $region24
        $region23: #{tpu_custom_call.1} parent=15 // pred_region
          %s178 = sand.u32 %s67, 1
          %s179 = scalar_lea.sflag [#allocation5], %s178
          %s180 = sand.u32 %s67, 1
          %s181 = smul.addr %s180, 4
          %s182 = scalar_lea.vmem [#allocation4], %s181
          %s184 = ssub.s32 64, 64
          %185 = vsyncadd %s179, %s184
          %s186 = smul.addr %s23, 2
          %s187 = smul.addr %s22, 2
          %s188 = sadd.s32 %s186, %s187
          %s189 = smul.addr %s188, 32
          %s190 = scalar_lea.hbm %s1, %s189
          %s192 = sshll.u32 %s182, 4
          %s193 = int_to_ptr.vmem [resolvable:$true] %s192
          %195 = dma.hbm_to_vmem [thread:$0]  %s190, 64, %s193, %s179
        $region24: #{tpu_custom_call.1} parent=15 // pred_fallthru
          _
        // Predicated region
        $region25: #{tpu_custom_call.1} parent=15 // pred_check
          %p196 = pneg %p103
        $region26: #{tpu_custom_call.1} parent=15 // pred_check_branch
          %198 = sbr.rel (%p196) target = $region28
        $region27: #{tpu_custom_call.1} parent=15 // pred_region
          %p199 = scmp.lt.s32.totalorder %s22, 1
          %s200 = scalar_select %p199, %s22, 1
          %s201 = smul.addr %s200, 2
          %s202 = scalar_lea.vmem %s2, %s201
        $region28: #{tpu_custom_call.1} parent=15 // pred_fallthru
          _
      $region16: #{tpu_custom_call.1} parent=5 // pred_fallthru
        _
      %p203 = scmp.le.s32.totalorder 1, %s15
      %p204 = scmp.lt.s32.totalorder %s15, 3
      %p205 = pnand %p203, %p204
      %p206 = pneg %p205
      // Predicated region
      $region29: #{tpu_custom_call.1} parent=5 // pred_check
        _
      $region30: #{tpu_custom_call.1} parent=5 // pred_check_branch
        %208 = sbr.rel (%p205) target = $region32
      $region31: #{tpu_custom_call.1} parent=5 // pred_region
        %s209 = ssub.s32 %s15, 1
        %s210 = sand.u32 %s42, 1
        %s211 = scalar_lea.sflag [#allocation3], %s210
        %s212 = sand.u32 %s42, 1
        %s213 = smul.addr %s212, 4
        %s214 = scalar_lea.vmem [#allocation2], %s213
        // Predicated region
        $region33: #{tpu_custom_call.1} parent=31 // pred_check
          %p215 = pneg %p55
        $region34: #{tpu_custom_call.1} parent=31 // pred_check_branch
          %217 = sbr.rel (%p215) target = $region36
        $region35: #{tpu_custom_call.1} parent=31 // pred_region
          %218 = dma.done %s211, 64
        $region36: #{tpu_custom_call.1} parent=31 // pred_fallthru
          _
        %s219 = sand.u32 %s70, 1
        %s220 = scalar_lea.sflag [#allocation5], %s219
        %s221 = sand.u32 %s70, 1
        %s222 = smul.addr %s221, 4
        %s223 = scalar_lea.vmem [#allocation4], %s222
        // Predicated region
        $region37: #{tpu_custom_call.1} parent=31 // pred_check
          %p224 = pneg %p83
        $region38: #{tpu_custom_call.1} parent=31 // pred_check_branch
          %226 = sbr.rel (%p224) target = $region40
        $region39: #{tpu_custom_call.1} parent=31 // pred_region
          %227 = dma.done %s220, 64
        $region40: #{tpu_custom_call.1} parent=31 // pred_fallthru
          _
        %s228 = sand.u32 %s42, 1
        %s229 = scalar_lea.sflag [#allocation3], %s228
        %s230 = sand.u32 %s42, 1
        %s231 = smul.addr %s230, 4
        %s232 = scalar_lea.vmem [#allocation2], %s231
        %p233 = pneg %p55
        %p234 = pneg %p52
        %s235 = sand.u32 %s70, 1
        %s236 = scalar_lea.sflag [#allocation5], %s235
        %s237 = sand.u32 %s70, 1
        %s238 = smul.addr %s237, 4
        %s239 = scalar_lea.vmem [#allocation4], %s238
        %p240 = pneg %p83
        %p241 = pneg %p80
        %p242 = scmp.lt.s32.totalorder %s24, 1
        %s243 = scalar_select %p242, %s24, 1
        %s244 = smul.addr %s243, 2
        %s245 = scalar_lea.vmem %s2, %s244
        %p246 = pneg %p109
        %p247 = pneg %p106
        %p248 = pneg %p135
        %p249 = pneg %p132
        %p250 = scmp.lt.s32.totalorder %s24, 1
        %s251 = scalar_select %p250, %s24, 1
        %s252 = scalar_lea.vmem %s3, %s251
        %p253 = scmp.lt.s32.totalorder %s24, 1
        %s254 = scalar_select %p253, %s24, 1
        %s255 = smul.addr %s254, 2
        %s256 = scalar_lea.vmem %s2, %s255
        %p257 = scmp.lt.s32.totalorder %s24, 1
        %s258 = scalar_select %p257, %s24, 1
        %s259 = scalar_lea.vmem %s3, %s258
        %p260 = scmp.eq.s32.totalorder %s25, 0
        // Predicated region
        $region41: #{tpu_custom_call.1} parent=31 // pred_check
          %p261 = pneg %p260
        $region42: #{tpu_custom_call.1} parent=31 // pred_check_branch
          %263 = sbr.rel (%p261) target = $region44
        $region43: #{tpu_custom_call.1} parent=31 // pred_region
          %vm264 = vcmask 0
          %265 = vst.msk [vmem:[%s259] sm:$0x1] %vm264, 0.0
        $region44: #{tpu_custom_call.1} parent=31 // pred_fallthru
          _
        %v266 = vld [vmem:[%s214] sm:$0xf]
        %v267 = vunpack.c.l.bf16 %v266
        %v268 = vld [vmem:[%s223] sm:$0xf]
        %v269 = vunpack.c.l.bf16 %v268
        %v270 = vld [vmem:[%s256] sm:$0x3]
        %vm271 = vcmp.gt.f32.partialorder %v270, 0.0
        %v272 = vsel %vm271, 1, 0
        %v273 = vlaneseq
        %v274 = vshrl.u32 %v273, 7
        %v275 = vsub.s32 0, %v274
        %v276 = vrot.slane %v272, %v275
        %v277 = vlaneseq
        %v278 = vshrl.u32 %v277, 7
        %v279 = vsub.s32 1, %v278
        %v280 = vrot.slane %v272, %v279
        %vm281 = vcmp.eq.s32.totalorder %v276, 1
        %vm282 = vcmp.eq.s32.totalorder %v280, 1
        %v284 = vcombine.high %v267, %v267
        %v286 = vsel %vm281, %v267, -1e+30
        %v287 = vsel %vm282, %v284, -1e+30
        %v289 = vcombine.high %v269, %v269
        %v291 = vsel %vm281, %v269, -1e+30
        %v292 = vsel %vm282, %v289, -1e+30
        %vm293 = vcmask 1043456
        %v294 = vsel %vm293, %v286, -inf
        %v295 = vsel %vm293, %v287, -inf
        %v296 = vmax.f32 %v294, %v295
        %297 = vmax.xlane.f32.xlu0 %v296
        %v298 = vpop.xlane.xlu0 %297
        %v299 = vsel %vm293, %v291, -inf
        %v300 = vsel %vm293, %v292, -inf
        %v301 = vmax.f32 %v299, %v300
        %302 = vmax.xlane.f32.xlu0 %v301
        %v303 = vpop.xlane.xlu0 %302
        %v304 = vsub.f32 %v286, %v298
        %v305 = vsub.f32 %v287, %v298
        %v306 = vmul.f32 %v304, 1.442695
        %v307 = vpow.pop %v306
        %v308 = vmul.f32 %v305, 1.442695
        %v309 = vpow.pop %v308
        %v310 = vsub.f32 %v291, %v303
        %v311 = vsub.f32 %v292, %v303
        %v312 = vmul.f32 %v310, 1.442695
        %v313 = vpow.pop %v312
        %v314 = vmul.f32 %v311, 1.442695
        %v315 = vpow.pop %v314
        %v316 = vsel %vm293, %v307, 0.0
        %v317 = vsel %vm293, %v309, 0.0
        %v318 = vadd.f32 %v316, %v317
        %319 = vadd.xlane.f32.xlu0 %v318
        %v320 = vpop.xlane.xlu0 %319
        %v321 = vsel %vm293, %v313, 0.0
        %v322 = vsel %vm293, %v315, 0.0
        %v323 = vadd.f32 %v321, %v322
        %324 = vadd.xlane.f32.xlu0 %v323
        %v325 = vpop.xlane.xlu0 %324
        %v326 = vsub.f32 %v269, %v267
        %v328 = vcombine.high %v326, %v326
        %v330 = vmul.f32 %v313, %v326
        %v331 = vmul.f32 %v315, %v328
        %v332 = vsel %vm293, %v330, 0.0
        %v333 = vsel %vm293, %v331, 0.0
        %v334 = vadd.f32 %v332, %v333
        %335 = vadd.xlane.f32.xlu0 %v334
        %v336 = vpop.xlane.xlu0 %335
        %v337 = vrcp.pop %v325
        %v338 = vmul.f32 %v336, %v337
        %v339 = vsub.f32 %v298, %v303
        %v340 = vadd.f32 %v338, %v339
        %v341 = vlog2.pop %v320
        %v342 = vmul.f32 %v341, 0.6931472
        %v343 = vlog2.pop %v325
        %v344 = vmul.f32 %v343, 0.6931472
        %v345 = vsub.f32 %v342, %v344
        %v346 = vadd.f32 %v340, %v345
        %v347 = vld [vmem:[%s259] sm:$0x1]
        %vm348 = vcmask 3072
        %v349 = vsel %vm348, %v346, 0.0
        %350 = vadd.xlane.f32.xlu0 %v349
        %v351 = vpop.xlane.xlu0 %350
        %v352 = vrot.slane %v351, 4
        %v353 = vadd.f32 %v351, %v352
        %v354 = vrot.slane %v353, 2
        %v355 = vadd.f32 %v353, %v354
        %v356 = vrot.slane %v355, 1
        %v357 = vadd.f32 %v355, %v356
        %s358 = vtos %v357
        %v359 = vstv %s358
        %v360 = vadd.f32 %v347, %v359
        %vm361 = vcmask 0
        %362 = vst.msk [vmem:[%s259] sm:$0x1] %vm361, %v360
        %p363 = scmp.lt.s32.totalorder %s24, 1
        %s364 = scalar_select %p363, %s24, 1
        %s365 = scalar_lea.vmem %s3, %s364
        // Predicated region
        $region45: #{tpu_custom_call.1} parent=31 // pred_check
          %p366 = pneg %p132
        $region46: #{tpu_custom_call.1} parent=31 // pred_check_branch
          %368 = sbr.rel (%p366) target = $region48
        $region47: #{tpu_custom_call.1} parent=31 // pred_region
          _
        $region48: #{tpu_custom_call.1} parent=31 // pred_fallthru
          _
      $region32: #{tpu_custom_call.1} parent=5 // pred_fallthru
        _
      %p369 = scmp.le.s32.totalorder 2, %s15
      // Predicated region
      $region49: #{tpu_custom_call.1} parent=5 // pred_check
        %p370 = pneg %p369
      $region50: #{tpu_custom_call.1} parent=5 // pred_check_branch
        %372 = sbr.rel (%p370) target = $region52
      $region51: #{tpu_custom_call.1} parent=5 // pred_region
        %s373 = ssub.s32 %s15, 2
        // Predicated region
        $region53: #{tpu_custom_call.1} parent=51 // pred_check
          %p374 = pneg %p138
        $region54: #{tpu_custom_call.1} parent=51 // pred_check_branch
          %376 = sbr.rel (%p374) target = $region56
        $region55: #{tpu_custom_call.1} parent=51 // pred_region
          %p377 = scmp.lt.s32.totalorder %s26, 1
          %s378 = scalar_select %p377, %s26, 1
          %s379 = scalar_lea.vmem %s3, %s378
        $region56: #{tpu_custom_call.1} parent=51 // pred_fallthru
          _
      $region52: #{tpu_custom_call.1} parent=5 // pred_fallthru
        _
    $region6: #{tpu_custom_call.1} parent=1 // loop_footer
      %s19 = sadd.s32 1, %s15
    $region7: #{tpu_custom_call.1} parent=1 // loop_footer_branch
      %14 = sbr.rel target = $region3
    $region8: #{tpu_custom_call.1} parent=1 // loop_exit
      _
    %380 = vsyncpa [#allocation3], 1
    %s381 = scalar_lea.sflag [#allocation3], 1
    %382 = vsyncpa %s381, 1
    %383 = vsyncpa [#allocation5], 1
    %s384 = scalar_lea.sflag [#allocation5], 1
    %385 = vsyncpa %s384, 1

</llo_original>
